<compile_context>
chip_gen: v5e
topology: v5e:2x2
jax: 0.10.0
libtpu: 0.0.40
codegen_flags: <defaults>
</compile_context>

<pallas_src>
import jax
import jax.numpy as jnp
from jax import lax
from jax.experimental import pallas as pl
from jax.experimental.pallas import tpu as pltpu

EPS = 1e-5          # nn.BatchNorm1d default
LANE = 128          # TPU lane width
NEG_BIG = -1e30     # bias value for padded output logits (exp() -> 0)


def _round_up(n, m):
    return ((n + m - 1) // m) * m


def _full_spec(shape):
    # Gridless call: each BlockSpec covers the whole array.
    return pl.BlockSpec(shape, lambda: (0,) * len(shape))


def _make_kernel(in_p, lane, batch):
    """Build the fused MLP kernel for padded dims (in_p, lane) and batch size."""
    inv_b = 1.0 / float(batch)

    def kernel(x_ref, w_ref, vec_ref, out_ref):
        # x_ref   : (B, in_p)              bf16
        # w_ref   : (in_p + 2*lane, lane)  bf16   rows = [W1 ; W2 ; W3]
        # vec_ref : (8, lane)              f32    rows = [g1, b1n, g2, b2n, b3, 0, 0, 0]
        # out_ref : (B, lane)              f32    (pad lanes hold garbage; sliced off outside)
        x = x_ref[...]
        w1 = w_ref[0:in_p, :]
        w2 = w_ref[in_p:in_p + lane, :]
        w3 = w_ref[in_p + lane:in_p + 2 * lane, :]

        g1 = vec_ref[0:1, :]
        be1 = vec_ref[1:2, :]
        g2 = vec_ref[2:3, :]
        be2 = vec_ref[3:4, :]
        b3 = vec_ref[4:5, :]

        # ---- fc1 (bias cancelled by BN) + fused BN (training stats) + relu ----
        h1 = jnp.dot(x, w1, preferred_element_type=jnp.float32)        # (B, lane) f32
        m1 = jnp.sum(h1, axis=0, keepdims=True) * inv_b                 # E[h]
        q1 = jnp.sum(h1 * h1, axis=0, keepdims=True) * inv_b            # E[h^2]
        var1 = jnp.maximum(q1 - m1 * m1, 0.0)                           # biased var
        sc1 = g1 * lax.rsqrt(var1 + EPS)
        sh1 = be1 - m1 * sc1
        h1 = jnp.maximum(h1 * sc1 + sh1, 0.0).astype(jnp.bfloat16)

        # ---- fc2 + fused BN + relu -------------------------------------------
        h2 = jnp.dot(h1, w2, preferred_element_type=jnp.float32)
        m2 = jnp.sum(h2, axis=0, keepdims=True) * inv_b
        q2 = jnp.sum(h2 * h2, axis=0, keepdims=True) * inv_b
        var2 = jnp.maximum(q2 - m2 * m2, 0.0)
        sc2 = g2 * lax.rsqrt(var2 + EPS)
        sh2 = be2 - m2 * sc2
        h2 = jnp.maximum(h2 * sc2 + sh2, 0.0).astype(jnp.bfloat16)

        # ---- fc3 + log_softmax (pad lanes biased to -1e30 -> exp() == 0) ------
        h3 = jnp.dot(h2, w3, preferred_element_type=jnp.float32) + b3
        m = jnp.max(h3, axis=1, keepdims=True)
        z = h3 - m
        lse = jnp.log(jnp.sum(jnp.exp(z), axis=1, keepdims=True))
        out_ref[...] = z - lse

    return kernel


def pack_params(params, input_size, hidden1, hidden2, output_size):
    """Pad to lane-dense shapes, cast weights to bf16, pack into 2 arrays."""
    (w1, b1, g1, beta1, w2, b2, g2, beta2, w3, b3) = params
    del b1, b2  # mathematically cancelled by training-mode BatchNorm

    in_p = _round_up(input_size, 16)                       # bf16 sublane alignment
    lane = _round_up(max(hidden1, hidden2, output_size), LANE)

    def pad2(a, rows, cols, fill=0.0):
        r, c = a.shape
        return jnp.pad(a, ((0, rows - r), (0, cols - c)), constant_values=fill)

    w1p = pad2(w1, in_p, lane).astype(jnp.bfloat16)
    w2p = pad2(w2, lane, lane).astype(jnp.bfloat16)
    w3p = pad2(w3, lane, lane).astype(jnp.bfloat16)
    w_stack = jnp.concatenate([w1p, w2p, w3p], axis=0)     # (in_p + 2*lane, lane) bf16

    vec = jnp.concatenate(
        [
            pad2(g1, 1, lane),                             # gamma pad = 0 -> pad cols stay 0
            pad2(beta1, 1, lane),
            pad2(g2, 1, lane),
            pad2(beta2, 1, lane),
            pad2(b3, 1, lane, fill=NEG_BIG),               # pad logits -> -1e30
            jnp.zeros((3, lane), jnp.float32),
        ],
        axis=0,
    ).astype(jnp.float32)                                  # (8, lane) f32

    return w_stack, vec, in_p, lane


def make_forward(batch, input_size, output_size, in_p, lane):
    kernel = _make_kernel(in_p, lane, batch)

    @jax.jit
    def forward(x, w_stack, vec):
        xp = x
        if input_size < in_p:
            xp = jnp.pad(xp, ((0, 0), (0, in_p - input_size)))
        xp = xp.astype(jnp.bfloat16)

        out = pl.pallas_call(
            kernel,
            out_shape=jax.ShapeDtypeStruct((batch, lane), jnp.float32),
            in_specs=[
                _full_spec(xp.shape),
                _full_spec(w_stack.shape),
                _full_spec(vec.shape),
            ],
            out_specs=_full_spec((batch, lane)),
            compiler_params=pltpu.CompilerParams(vmem_limit_bytes=32 * 1024 * 1024),
        )(xp, w_stack, vec)
        return out[:, :output_size]

    return forward


def init_params(key, input_size, hidden_size1, hidden_size2, output_size):
    """PyTorch-default-style init. Linear weights stored transposed as (in, out)."""
    keys = jax.random.split(key, 6)

    def linear(kw, kb, fan_in, fan_out):
        bound = 1.0 / jnp.sqrt(float(fan_in))
        w = jax.random.uniform(kw, (fan_in, fan_out), jnp.float32, -bound, bound)
        b = jax.random.uniform(kb, (1, fan_out), jnp.float32, -bound, bound)
        return w, b

    w1, b1 = linear(keys[0], keys[1], input_size, hidden_size1)
    w2, b2 = linear(keys[2], keys[3], hidden_size1, hidden_size2)
    w3, b3 = linear(keys[4], keys[5], hidden_size2, output_size)

    g1 = jnp.ones((1, hidden_size1), jnp.float32)
    beta1 = jnp.zeros((1, hidden_size1), jnp.float32)
    g2 = jnp.ones((1, hidden_size2), jnp.float32)
    beta2 = jnp.zeros((1, hidden_size2), jnp.float32)

    return (w1, b1, g1, beta1, w2, b2, g2, beta2, w3, b3)


def reference_forward_f32(x, params):
    """Pure-f32 JAX reference identical to the PyTorch forward (training-mode BN)."""
    (w1, b1, g1, beta1, w2, b2, g2, beta2, w3, b3) = params

    def bn(h, g, beta):
        mean = jnp.mean(h, axis=0, keepdims=True)
        var = jnp.mean((h - mean) ** 2, axis=0, keepdims=True)
        return (h - mean) / jnp.sqrt(var + EPS) * g + beta

    h = jnp.maximum(bn(x @ w1 + b1, g1, beta1), 0.0)
    h = jnp.maximum(bn(h @ w2 + b2, g2, beta2), 0.0)
    h = h @ w3 + b3
    return jax.nn.log_softmax(h, axis=1)


def reference_forward_matched(x, params):
    """Reference replicating the kernel's exact numerics (bf16 matmul inputs,
    f32 accumulation, fused single-pass BN, biases dropped)."""
    (w1, _b1, g1, beta1, w2, _b2, g2, beta2, w3, b3) = params

    def bn(h, g, beta):
        mean = jnp.mean(h, axis=0, keepdims=True)
        var = jnp.maximum(jnp.mean(h * h, axis=0, keepdims=True) - mean * mean, 0.0)
        scale = g * lax.rsqrt(var + EPS)
        return h * scale + (beta - mean * scale)

    def mm(a, w):
        return jnp.dot(a.astype(jnp.bfloat16), w.astype(jnp.bfloat16),
                       preferred_element_type=jnp.float32)

    h = jnp.maximum(bn(mm(x, w1), g1, beta1), 0.0)
    h = jnp.maximum(bn(mm(h, w2), g2, beta2), 0.0)
    h3 = mm(h, w3) + b3
    m = jnp.max(h3, axis=1, keepdims=True)
    z = h3 - m
    return z - jnp.log(jnp.sum(jnp.exp(z), axis=1, keepdims=True))


if __name__ == "__main__":
    key = jax.random.PRNGKey(0)
    k_x, k_p = jax.random.split(key)

    batch = 8
    input_size, hidden_size1, hidden_size2, output_size = 32, 64, 32, 16

    x = jax.random.normal(k_x, (batch, input_size), jnp.float32)
    params = init_params(k_p, input_size, hidden_size1, hidden_size2, output_size)

    w_stack, vec, in_p, lane = pack_params(
        params, input_size, hidden_size1, hidden_size2, output_size)
    forward = make_forward(batch, input_size, output_size, in_p, lane)

    out = jax.block_until_ready(forward(x, w_stack, vec))
    assert out.shape == (batch, output_size)

    # Tight check vs a reference with identical numerics (validates the kernel).
    ref_matched = reference_forward_matched(x, params)
    assert jnp.allclose(out, ref_matched, atol=1e-3, rtol=1e-3), \
        "mismatch vs matched-precision reference"

    # Loose check vs the pure-f32 PyTorch-equivalent reference (bf16 matmuls).
    ref_f32 = reference_forward_f32(x, params)
    assert jnp.allclose(out, ref_f32, atol=1e-1, rtol=1e-1), \
        "mismatch vs f32 reference"

    print("KERNEL_OK")
</pallas_src>

<mosaic_0001>
module attributes {stable_mosaic.version = 11 : i64} {
  func.func @kernel(%arg0: memref<8x32xbf16, #tpu.memory_space<vmem>>, %arg1: memref<288x128xbf16, #tpu.memory_space<vmem>>, %arg2: memref<8x128xf32, #tpu.memory_space<vmem>>, %arg3: memref<8x128xf32, #tpu.memory_space<vmem>>) attributes {dimension_semantics = [], scalar_prefetch = 0 : i64, scratch_operands = 0 : i64, tpu.core_type = #tpu.core_type<tc>} {
    %c0 = arith.constant 0 : index
    %c0_0 = arith.constant 0 : index
    %0 = vector.load %arg0[%c0, %c0_0] : memref<8x32xbf16, #tpu.memory_space<vmem>>, vector<8x32xbf16>
    %c0_1 = arith.constant 0 : index
    %c0_2 = arith.constant 0 : index
    %1 = vector.load %arg1[%c0_1, %c0_2] : memref<288x128xbf16, #tpu.memory_space<vmem>>, vector<32x128xbf16>
    %c32 = arith.constant 32 : index
    %c0_3 = arith.constant 0 : index
    %2 = vector.load %arg1[%c32, %c0_3] : memref<288x128xbf16, #tpu.memory_space<vmem>>, vector<128x128xbf16>
    %c160 = arith.constant 160 : index
    %c0_4 = arith.constant 0 : index
    %3 = vector.load %arg1[%c160, %c0_4] : memref<288x128xbf16, #tpu.memory_space<vmem>>, vector<128x128xbf16>
    %c0_5 = arith.constant 0 : index
    %c0_6 = arith.constant 0 : index
    %4 = vector.load %arg2[%c0_5, %c0_6] : memref<8x128xf32, #tpu.memory_space<vmem>>, vector<1x128xf32>
    %c1 = arith.constant 1 : index
    %c0_7 = arith.constant 0 : index
    %5 = vector.load %arg2[%c1, %c0_7] : memref<8x128xf32, #tpu.memory_space<vmem>>, vector<1x128xf32>
    %c2 = arith.constant 2 : index
    %c0_8 = arith.constant 0 : index
    %6 = vector.load %arg2[%c2, %c0_8] : memref<8x128xf32, #tpu.memory_space<vmem>>, vector<1x128xf32>
    %c3 = arith.constant 3 : index
    %c0_9 = arith.constant 0 : index
    %7 = vector.load %arg2[%c3, %c0_9] : memref<8x128xf32, #tpu.memory_space<vmem>>, vector<1x128xf32>
    %c4 = arith.constant 4 : index
    %c0_10 = arith.constant 0 : index
    %8 = vector.load %arg2[%c4, %c0_10] : memref<8x128xf32, #tpu.memory_space<vmem>>, vector<1x128xf32>
    %cst = arith.constant dense<0.000000e+00> : vector<8x128xf32>
    %9 = tpu.matmul %0, %1, %cst {dimension_numbers = #tpu.dot_dimension_numbers<[1], [0], [0], [1], [0, 0, 1, 1], [], []>} : vector<8x32xbf16>, vector<32x128xbf16>, vector<8x128xf32> -> vector<8x128xf32>
    %cst_11 = arith.constant dense<0.000000e+00> : vector<128xf32>
    %10 = vector.multi_reduction <add>, %9, %cst_11 [0] : vector<8x128xf32> to vector<128xf32>
    %11 = vector.shape_cast %10 : vector<128xf32> to vector<1x128xf32>
    %cst_12 = arith.constant 1.250000e-01 : f32
    %12 = vector.broadcast %cst_12 : f32 to vector<1x128xf32>
    %13 = arith.mulf %11, %12 : vector<1x128xf32>
    %14 = arith.mulf %9, %9 : vector<8x128xf32>
    %cst_13 = arith.constant dense<0.000000e+00> : vector<128xf32>
    %15 = vector.multi_reduction <add>, %14, %cst_13 [0] : vector<8x128xf32> to vector<128xf32>
    %16 = vector.shape_cast %15 : vector<128xf32> to vector<1x128xf32>
    %cst_14 = arith.constant 1.250000e-01 : f32
    %17 = vector.broadcast %cst_14 : f32 to vector<1x128xf32>
    %18 = arith.mulf %16, %17 : vector<1x128xf32>
    %19 = arith.mulf %13, %13 : vector<1x128xf32>
    %20 = arith.subf %18, %19 : vector<1x128xf32>
    %cst_15 = arith.constant 0.000000e+00 : f32
    %21 = vector.broadcast %cst_15 : f32 to vector<1x128xf32>
    %22 = arith.maximumf %20, %21 : vector<1x128xf32>
    %cst_16 = arith.constant 9.99999974E-6 : f32
    %23 = vector.broadcast %cst_16 : f32 to vector<1x128xf32>
    %24 = arith.addf %22, %23 : vector<1x128xf32>
    %25 = math.rsqrt %24 : vector<1x128xf32>
    %26 = arith.mulf %4, %25 : vector<1x128xf32>
    %27 = arith.mulf %13, %26 : vector<1x128xf32>
    %28 = arith.subf %5, %27 : vector<1x128xf32>
    %29 = vector.broadcast %26 : vector<1x128xf32> to vector<8x128xf32>
    %30 = arith.mulf %9, %29 : vector<8x128xf32>
    %31 = vector.broadcast %28 : vector<1x128xf32> to vector<8x128xf32>
    %32 = arith.addf %30, %31 : vector<8x128xf32>
    %cst_17 = arith.constant 0.000000e+00 : f32
    %33 = vector.broadcast %cst_17 : f32 to vector<8x128xf32>
    %34 = arith.maximumf %32, %33 : vector<8x128xf32>
    %35 = arith.truncf %34 : vector<8x128xf32> to vector<8x128xbf16>
    %cst_18 = arith.constant dense<0.000000e+00> : vector<8x128xf32>
    %36 = tpu.matmul %35, %2, %cst_18 {dimension_numbers = #tpu.dot_dimension_numbers<[1], [0], [0], [1], [0, 0, 1, 1], [], []>} : vector<8x128xbf16>, vector<128x128xbf16>, vector<8x128xf32> -> vector<8x128xf32>
    %cst_19 = arith.constant dense<0.000000e+00> : vector<128xf32>
    %37 = vector.multi_reduction <add>, %36, %cst_19 [0] : vector<8x128xf32> to vector<128xf32>
    %38 = vector.shape_cast %37 : vector<128xf32> to vector<1x128xf32>
    %cst_20 = arith.constant 1.250000e-01 : f32
    %39 = vector.broadcast %cst_20 : f32 to vector<1x128xf32>
    %40 = arith.mulf %38, %39 : vector<1x128xf32>
    %41 = arith.mulf %36, %36 : vector<8x128xf32>
    %cst_21 = arith.constant dense<0.000000e+00> : vector<128xf32>
    %42 = vector.multi_reduction <add>, %41, %cst_21 [0] : vector<8x128xf32> to vector<128xf32>
    %43 = vector.shape_cast %42 : vector<128xf32> to vector<1x128xf32>
    %cst_22 = arith.constant 1.250000e-01 : f32
    %44 = vector.broadcast %cst_22 : f32 to vector<1x128xf32>
    %45 = arith.mulf %43, %44 : vector<1x128xf32>
    %46 = arith.mulf %40, %40 : vector<1x128xf32>
    %47 = arith.subf %45, %46 : vector<1x128xf32>
    %cst_23 = arith.constant 0.000000e+00 : f32
    %48 = vector.broadcast %cst_23 : f32 to vector<1x128xf32>
    %49 = arith.maximumf %47, %48 : vector<1x128xf32>
    %cst_24 = arith.constant 9.99999974E-6 : f32
    %50 = vector.broadcast %cst_24 : f32 to vector<1x128xf32>
    %51 = arith.addf %49, %50 : vector<1x128xf32>
    %52 = math.rsqrt %51 : vector<1x128xf32>
    %53 = arith.mulf %6, %52 : vector<1x128xf32>
    %54 = arith.mulf %40, %53 : vector<1x128xf32>
    %55 = arith.subf %7, %54 : vector<1x128xf32>
    %56 = vector.broadcast %53 : vector<1x128xf32> to vector<8x128xf32>
    %57 = arith.mulf %36, %56 : vector<8x128xf32>
    %58 = vector.broadcast %55 : vector<1x128xf32> to vector<8x128xf32>
    %59 = arith.addf %57, %58 : vector<8x128xf32>
    %cst_25 = arith.constant 0.000000e+00 : f32
    %60 = vector.broadcast %cst_25 : f32 to vector<8x128xf32>
    %61 = arith.maximumf %59, %60 : vector<8x128xf32>
    %62 = arith.truncf %61 : vector<8x128xf32> to vector<8x128xbf16>
    %cst_26 = arith.constant dense<0.000000e+00> : vector<8x128xf32>
    %63 = tpu.matmul %62, %3, %cst_26 {dimension_numbers = #tpu.dot_dimension_numbers<[1], [0], [0], [1], [0, 0, 1, 1], [], []>} : vector<8x128xbf16>, vector<128x128xbf16>, vector<8x128xf32> -> vector<8x128xf32>
    %64 = vector.broadcast %8 : vector<1x128xf32> to vector<8x128xf32>
    %65 = arith.addf %63, %64 : vector<8x128xf32>
    %cst_27 = arith.constant dense<0xFF800000> : vector<8xf32>
    %66 = vector.multi_reduction <maximumf>, %65, %cst_27 [1] : vector<8x128xf32> to vector<8xf32>
    %67 = vector.shape_cast %66 : vector<8xf32> to vector<8x1xf32>
    %68 = vector.broadcast %67 : vector<8x1xf32> to vector<8x128xf32>
    %69 = arith.subf %65, %68 : vector<8x128xf32>
    %70 = math.exp %69 : vector<8x128xf32>
    %cst_28 = arith.constant dense<0.000000e+00> : vector<8xf32>
    %71 = vector.multi_reduction <add>, %70, %cst_28 [1] : vector<8x128xf32> to vector<8xf32>
    %72 = vector.shape_cast %71 : vector<8xf32> to vector<8x1xf32>
    %73 = math.log %72 : vector<8x1xf32>
    %74 = vector.broadcast %73 : vector<8x1xf32> to vector<8x128xf32>
    %75 = arith.subf %69, %74 : vector<8x128xf32>
    %c0_29 = arith.constant 0 : index
    %c0_30 = arith.constant 0 : index
    %76 = vector.load %arg3[%c0_29, %c0_30] : memref<8x128xf32, #tpu.memory_space<vmem>>, vector<8x128xf32>
    tpu.vector_store %arg3[%c0_29, %c0_30], %75 {strides = array<i32>} : memref<8x128xf32, #tpu.memory_space<vmem>>, vector<8x128xf32>,
    return
  }
}

</mosaic_0001>

<llo_original>
// kernel: forward.1
$region0: #{forward.1}
  #allocation0 [shape = 'u32[]', space=smem, size = 0x4, offset = 0x4, fixed_abs, tag = 'smem constant byte address 0x4 - core index']
  #allocation1 [shape = 'u32[72,128]{1,0:T(1,128)}', space=vmem, size = 0x9000, scoped, tag = 'internal scratch']
  %s0 = inlined_call_operand.vmem [shape: bf16[8,32], index: 0, kind: input, shape index: {}]
  %s1 = inlined_call_operand.hbm [shape: bf16[288,128], index: 1, kind: input, shape index: {}]
  %s2 = inlined_call_operand.vmem [shape: f32[8,128], index: 2, kind: input, shape index: {}]
  %s3 = inlined_call_operand.hbm [shape: f32[8,128], index: 3, kind: output, shape index: {}]
  %s4 = sld [smem:[#allocation0]]
  $region26: #{forward.1} parent=0
    _
  %s6 = ssub.s32 1, %s4
  %s7 = scalar_select 0, %s6, %s4
  $region1: #{forward.1} parent=0
    #allocation2 [shape = 'u8[73728]{0}', space=vmem, size = 0x12000, scoped, tag = 'input window, operand 1, single buffered']
    #allocation3 [shape = 's32[1]{0}', space=sflag, size = 0x4, scoped, tag = 'scoped memory for forward.1']
    #allocation4 [shape = 's32[1]{0}', space=sflag, size = 0x4, scoped, tag = 'scoped memory for forward.1']
    #allocation5 [shape = 'u8[4096]{0}', space=vmem, size = 0x1000, scoped, tag = 'output window, operand 0, single buffered']
    %8 = vsyncpa [#allocation3], 0
    %9 = vsyncpa [#allocation4], 0
    // Predicated region
    $region2: #{forward.1} parent=1 // pred_check
      _
    $region3: #{forward.1} parent=1 // pred_check_branch
      %11 = sbr.rel (0) target = $region5
    $region4: #{forward.1} parent=1 // pred_region
      _
    $region5: #{forward.1} parent=1 // pred_fallthru
      _
    // Predicated region
    $region6: #{forward.1} parent=1 // pred_check
      _
    $region7: #{forward.1} parent=1 // pred_check_branch
      %13 = sbr.rel (0) target = $region9
    $region8: #{forward.1} parent=1 // pred_region
      %15 = vsyncadd [#allocation3], 0
      %s16 = sshll.u32 %s1, 4
      %s17 = int_to_ptr.hbm [resolvable:$true] %s16
      %s18 = sshll.u32 [#allocation2], 4
      %s19 = int_to_ptr.vmem [resolvable:$true] %s18
      %24 = dma.hbm_to_vmem [thread:$0]  %s17, 2304, %s19, [#allocation3], 64, 64, 4
    $region9: #{forward.1} parent=1 // pred_fallthru
      _
    // Predicated region
    $region10: #{forward.1} parent=1 // pred_check
      _
    $region11: #{forward.1} parent=1 // pred_check_branch
      %26 = sbr.rel (0) target = $region13
    $region12: #{forward.1} parent=1 // pred_region
      _
    $region13: #{forward.1} parent=1 // pred_fallthru
      _
    // Predicated region
    $region14: #{forward.1} parent=1 // pred_check
      _
    $region15: #{forward.1} parent=1 // pred_check_branch
      %28 = sbr.rel (0) target = $region17
    $region16: #{forward.1} parent=1 // pred_region
      %30 = dma.done [#allocation3], 2304
    $region17: #{forward.1} parent=1 // pred_fallthru
      _
    %v32 = vld [vmem:[%s0] sm:$0xf]
    %v33 = vld [vmem:[#allocation2] sm:$0xf]
    %v34 = vld [vmem:[#allocation2 + $0x4] sm:$0xf]
    %v35 = vld [vmem:[#allocation2 + $0x8] sm:$0xf]
    %v36 = vld [vmem:[#allocation2 + $0xc] sm:$0xf]
    %v37 = vld [vmem:[#allocation2 + $0x10] sm:$0xf]
    %v38 = vld [vmem:[#allocation2 + $0x14] sm:$0xf]
    %v39 = vld [vmem:[#allocation2 + $0x18] sm:$0xf]
    %v40 = vld [vmem:[#allocation2 + $0x1c] sm:$0xf]
    %v41 = vld [vmem:[#allocation2 + $0x20] sm:$0xf]
    %v42 = vld [vmem:[#allocation2 + $0x24] sm:$0xf]
    %v43 = vld [vmem:[#allocation2 + $0x28] sm:$0xf]
    %v44 = vld [vmem:[#allocation2 + $0x2c] sm:$0xf]
    %v45 = vld [vmem:[#allocation2 + $0x30] sm:$0xf]
    %v46 = vld [vmem:[#allocation2 + $0x34] sm:$0xf]
    %v47 = vld [vmem:[#allocation2 + $0x38] sm:$0xf]
    %v48 = vld [vmem:[#allocation2 + $0x3c] sm:$0xf]
    %v49 = vld [vmem:[#allocation2 + $0x40] sm:$0xf]
    %v50 = vld [vmem:[#allocation2 + $0x44] sm:$0xf]
    %v51 = vld [vmem:[#allocation2 + $0x48] sm:$0xf]
    %v52 = vld [vmem:[#allocation2 + $0x4c] sm:$0xf]
    %v53 = vld [vmem:[#allocation2 + $0x50] sm:$0xf]
    %v54 = vld [vmem:[#allocation2 + $0x54] sm:$0xf]
    %v55 = vld [vmem:[#allocation2 + $0x58] sm:$0xf]
    %v56 = vld [vmem:[#allocation2 + $0x5c] sm:$0xf]
    %v57 = vld [vmem:[#allocation2 + $0x60] sm:$0xf]
    %v58 = vld [vmem:[#allocation2 + $0x64] sm:$0xf]
    %v59 = vld [vmem:[#allocation2 + $0x68] sm:$0xf]
    %v60 = vld [vmem:[#allocation2 + $0x6c] sm:$0xf]
    %v61 = vld [vmem:[#allocation2 + $0x70] sm:$0xf]
    %v62 = vld [vmem:[#allocation2 + $0x74] sm:$0xf]
    %v63 = vld [vmem:[#allocation2 + $0x78] sm:$0xf]
    %v64 = vld [vmem:[#allocation2 + $0x7c] sm:$0xf]
    %v65 = vld [vmem:[#allocation2 + $0x80] sm:$0xf]
    %v66 = vld [vmem:[#allocation2 + $0x84] sm:$0xf]
    %v67 = vld [vmem:[#allocation2 + $0x88] sm:$0xf]
    %v68 = vld [vmem:[#allocation2 + $0x8c] sm:$0xf]
    %v69 = vld [vmem:[%s2] sm:$0x1]
    %v70 = vld [vmem:[%s2 + $0x1] sm:$0x1]
    %v71 = vld [vmem:[%s2 + $0x2] sm:$0x1]
    %v72 = vld [vmem:[%s2 + $0x3] sm:$0x1]
    %v73 = vld [vmem:[%s2 + $0x4] sm:$0x1]
    %v78 = vunpack.c.l.b16 %v33
    %v79 = vunpack.c.l.b16 %v34
    %v80 = vunpack.c.l.b16 %v35
    %v81 = vunpack.c.l.b16 %v36
    %v82 = vpack.c.b16 %v79, %v78
    %v83 = vpack.c.b16 %v81, %v80
    %vm86 = vcmask 261120
    %v88 = vsel %vm86, %v32, 0
    %90 = vmatpush.bf16.msra.mxu0 0
    %91 = vmatpush.bf16.msra.mxu0 0
    %92 = vmatpush.bf16.msra.mxu0 0
    %93 = vmatpush.bf16.msra.mxu0 0
    %94 = vmatpush.bf16.msra.mxu0 0
    %95 = vmatpush.bf16.msra.mxu0 0
    %96 = vmatpush.bf16.msra.mxu0 %v83
    %97 = vmatpush.bf16.msra.mxu0 %v82
    %98 = vmatmul.bf16.gmra.mxu0 %v88
    %v99 = vpop.f32.mrf.mxu0
    %v100 = vadd.f32 0.0, %v99
    %v101 = vpop.f32.mrf.mxu0
    %102 = vdwg.mxu0
    %v103 = vrot.slane %v100, 4
    %v104 = vadd.f32 %v100, %v103
    %v105 = vrot.slane %v104, 2
    %v106 = vadd.f32 %v104, %v105
    %v107 = vrot.slane %v106, 1
    %v108 = vadd.f32 %v106, %v107
    %v109 = vmul.f32 %v108, 0.125
    %v110 = vmul.f32 %v100, %v100
    %v111 = vrot.slane %v110, 4
    %v112 = vadd.f32 %v110, %v111
    %v113 = vrot.slane %v112, 2
    %v114 = vadd.f32 %v112, %v113
    %v115 = vrot.slane %v114, 1
    %v116 = vadd.f32 %v114, %v115
    %v117 = vmul.f32 %v116, 0.125
    %v118 = vmul.f32 %v109, %v109
    %v119 = vsub.f32 %v117, %v118
    %v120 = vmax.f32 %v119, 0.0
    %v121 = vadd.f32 %v120, 1e-05
    %v122 = vrsqrt.pop %v121
    %v123 = vmul.f32 %v122, %v121
    %v124 = vmul.f32 %v123, %v122
    %v125 = vmul.f32 0.5, %v124
    %v126 = vsub.f32 1.5, %v125
    %v127 = vmul.f32 %v122, %v126
    %vm128 = vweird.f32 %v121
    %vm129 = vweird.f32 %v122
    %vm130 = vmor %vm128, %vm129
    %v131 = vsel %vm130, %v122, %v127
    %v132 = vmul.f32 %v69, %v131
    %v133 = vmul.f32 %v109, %v132
    %v134 = vsub.f32 %v70, %v133
    %v135 = vperm.slane %v132, 0
    %v136 = vmul.f32 %v100, %v135
    %v137 = vperm.slane %v134, 0
    %v138 = vadd.f32 %v136, %v137
    %v139 = vmax.f32 %v138, 0.0
    %v140 = vpack.c.bf16 %v139, %v139
    %v157 = vunpack.c.l.b16 %v37
    %v158 = vunpack.c.l.b16 %v38
    %v159 = vunpack.c.l.b16 %v39
    %v160 = vunpack.c.l.b16 %v40
    %v161 = vunpack.c.l.b16 %v41
    %v162 = vunpack.c.l.b16 %v42
    %v163 = vunpack.c.l.b16 %v43
    %v164 = vunpack.c.l.b16 %v44
    %v165 = vunpack.c.l.b16 %v45
    %v166 = vunpack.c.l.b16 %v46
    %v167 = vunpack.c.l.b16 %v47
    %v168 = vunpack.c.l.b16 %v48
    %v169 = vunpack.c.l.b16 %v49
    %v170 = vunpack.c.l.b16 %v50
    %v171 = vunpack.c.l.b16 %v51
    %v172 = vunpack.c.l.b16 %v52
    %v173 = vpack.c.b16 %v158, %v157
    %v174 = vpack.c.b16 %v160, %v159
    %v175 = vpack.c.b16 %v162, %v161
    %v176 = vpack.c.b16 %v164, %v163
    %v177 = vpack.c.b16 %v166, %v165
    %v178 = vpack.c.b16 %v168, %v167
    %v179 = vpack.c.b16 %v170, %v169
    %v180 = vpack.c.b16 %v172, %v171
    %189 = vmatpush.bf16.msra.mxu0 %v180
    %190 = vmatpush.bf16.msra.mxu0 %v179
    %191 = vmatpush.bf16.msra.mxu0 %v178
    %192 = vmatpush.bf16.msra.mxu0 %v177
    %193 = vmatpush.bf16.msra.mxu0 %v176
    %194 = vmatpush.bf16.msra.mxu0 %v175
    %195 = vmatpush.bf16.msra.mxu0 %v174
    %196 = vmatpush.bf16.msra.mxu0 %v173
    %197 = vmatmul.bf16.gmra.mxu0 %v140
    %v198 = vpop.f32.mrf.mxu0
    %v199 = vadd.f32 0.0, %v198
    %v200 = vpop.f32.mrf.mxu0
    %201 = vdwg.mxu0
    %v202 = vrot.slane %v199, 4
    %v203 = vadd.f32 %v199, %v202
    %v204 = vrot.slane %v203, 2
    %v205 = vadd.f32 %v203, %v204
    %v206 = vrot.slane %v205, 1
    %v207 = vadd.f32 %v205, %v206
    %v208 = vmul.f32 %v207, 0.125
    %v209 = vmul.f32 %v199, %v199
    %v210 = vrot.slane %v209, 4
    %v211 = vadd.f32 %v209, %v210
    %v212 = vrot.slane %v211, 2
    %v213 = vadd.f32 %v211, %v212
    %v214 = vrot.slane %v213, 1
    %v215 = vadd.f32 %v213, %v214
    %v216 = vmul.f32 %v215, 0.125
    %v217 = vmul.f32 %v208, %v208
    %v218 = vsub.f32 %v216, %v217
    %v219 = vmax.f32 %v218, 0.0
    %v220 = vadd.f32 %v219, 1e-05
    %v221 = vrsqrt.pop %v220
    %v222 = vmul.f32 %v221, %v220
    %v223 = vmul.f32 %v222, %v221
    %v224 = vmul.f32 0.5, %v223
    %v225 = vsub.f32 1.5, %v224
    %v226 = vmul.f32 %v221, %v225
    %vm227 = vweird.f32 %v220
    %vm228 = vweird.f32 %v221
    %vm229 = vmor %vm227, %vm228
    %v230 = vsel %vm229, %v221, %v226
    %v231 = vmul.f32 %v71, %v230
    %v232 = vmul.f32 %v208, %v231
    %v233 = vsub.f32 %v72, %v232
    %v234 = vperm.slane %v231, 0
    %v235 = vmul.f32 %v199, %v234
    %v236 = vperm.slane %v233, 0
    %v237 = vadd.f32 %v235, %v236
    %v238 = vmax.f32 %v237, 0.0
    %v239 = vpack.c.bf16 %v238, %v238
    %v240 = vperm.slane %v73, 0
    %v257 = vunpack.c.l.b16 %v53
    %v258 = vunpack.c.l.b16 %v54
    %v259 = vunpack.c.l.b16 %v55
    %v260 = vunpack.c.l.b16 %v56
    %v261 = vunpack.c.l.b16 %v57
    %v262 = vunpack.c.l.b16 %v58
    %v263 = vunpack.c.l.b16 %v59
    %v264 = vunpack.c.l.b16 %v60
    %v265 = vunpack.c.l.b16 %v61
    %v266 = vunpack.c.l.b16 %v62
    %v267 = vunpack.c.l.b16 %v63
    %v268 = vunpack.c.l.b16 %v64
    %v269 = vunpack.c.l.b16 %v65
    %v270 = vunpack.c.l.b16 %v66
    %v271 = vunpack.c.l.b16 %v67
    %v272 = vunpack.c.l.b16 %v68
    %v273 = vpack.c.b16 %v258, %v257
    %v274 = vpack.c.b16 %v260, %v259
    %v275 = vpack.c.b16 %v262, %v261
    %v276 = vpack.c.b16 %v264, %v263
    %v277 = vpack.c.b16 %v266, %v265
    %v278 = vpack.c.b16 %v268, %v267
    %v279 = vpack.c.b16 %v270, %v269
    %v280 = vpack.c.b16 %v272, %v271
    %289 = vmatpush.bf16.msra.mxu0 %v280
    %290 = vmatpush.bf16.msra.mxu0 %v279
    %291 = vmatpush.bf16.msra.mxu0 %v278
    %292 = vmatpush.bf16.msra.mxu0 %v277
    %293 = vmatpush.bf16.msra.mxu0 %v276
    %294 = vmatpush.bf16.msra.mxu0 %v275
    %295 = vmatpush.bf16.msra.mxu0 %v274
    %296 = vmatpush.bf16.msra.mxu0 %v273
    %297 = vmatmul.bf16.gmra.mxu0 %v239
    %v298 = vpop.f32.mrf.mxu0
    %v299 = vadd.f32 %v240, %v298
    %v300 = vpop.f32.mrf.mxu0
    %301 = vdwg.mxu0
    %302 = vmax.xlane.f32.xlu0 %v299
    %v303 = vpop.xlane.xlu0 %302
    %v304 = vsub.f32 %v299, %v303
    %v305 = vmul.f32 %v304, 1.442695
    %v306 = vpow.pop %v305
    %307 = vadd.xlane.f32.xlu0 %v306
    %v308 = vpop.xlane.xlu0 %307
    %v309 = vlog2.pop %v308
    %v310 = vmul.f32 %v309, 0.6931472
    %v311 = vsub.f32 %v304, %v310
    %312 = vst [vmem:[#allocation5] sm:$0xff] %v311
    // Predicated region
    $region18: #{forward.1} parent=1 // pred_check
      _
    $region19: #{forward.1} parent=1 // pred_check_branch
      %314 = sbr.rel (0) target = $region21
    $region20: #{forward.1} parent=1 // pred_region
      %316 = vsyncadd [#allocation4], 0
      %s318 = sshll.u32 [#allocation5], 4
      %s319 = int_to_ptr.vmem [resolvable:$true] %s318
      %s320 = sshll.u32 %s3, 4
      %s321 = int_to_ptr.hbm [resolvable:$true] %s320
      %323 = dma.vmem_to_hbm [thread:$0]  %s319, 128, %s321, [#allocation4]
    $region21: #{forward.1} parent=1 // pred_fallthru
      _
    // Predicated region
    $region22: #{forward.1} parent=1 // pred_check
      _
    $region23: #{forward.1} parent=1 // pred_check_branch
      %325 = sbr.rel (0) target = $region25
    $region24: #{forward.1} parent=1 // pred_region
      %327 = dma.done [#allocation4], 128
    $region25: #{forward.1} parent=1 // pred_fallthru
      _
    %328 = vsyncpa [#allocation3], 1
    %329 = vsyncpa [#allocation4], 1

</llo_original>
